<compile_context>
chip_gen: v7x
topology: tpu7x:2x2x1
jax: 0.10.0
libtpu: 0.0.40
codegen_flags: <defaults>
</compile_context>

<pallas_src>
import numpy as np
import jax
import jax.numpy as jnp
from jax.experimental import pallas as pl
from jax.experimental.pallas import tpu as pltpu

_IMG_ELEMS = 3 * 64 * 64             # 12288 elements per image
_LANE = 1024                         # 12288 = 12 * 1024 -> wide, fully lane-dense rows
_ROWS_PER_IMG = _IMG_ELEMS // _LANE  # 12 rows per image
_MAX_BLOCK_ROWS = 768                # 64 images / step: bf16-in + f32-out, double
                                     # buffered ~= 9 MiB, fits v5e/v6e/v7x scoped VMEM


# ------------------------------- Pallas kernel -------------------------------

def _cast_copy_kernel(x_ref, o_ref):
    # Tile is VMEM-resident; the cast runs on the VPU and the store is an
    # unmasked full-lane vst (last dim == 1024, a multiple of 128).
    o_ref[...] = x_ref[...].astype(o_ref.dtype)


# --------------------------------- wrapper -----------------------------------

def _round_up(v, m):
    return ((v + m - 1) // m) * m


def forward(x):
    """Pallas implementation of AnimalStudentNet.forward:
       x.contiguous().view(-1, 3, 64, 64).float()
    """
    total = x.size
    assert total % _IMG_ELEMS == 0, "input not reshapeable to (-1, 3, 64, 64)"
    n = total // _IMG_ELEMS

    # Fast path: already float32 -> .float() is a no-op, reshape is metadata only.
    if x.dtype == jnp.float32:
        return x.reshape(n, 3, 64, 64)

    # Row-major flatten to a lane-dense (rows, 1024) slab (metadata-only reshape,
    # identical element order to the contiguous NCHW view).
    rows_total = total // _LANE        # = n * 12
    x2d = x.reshape(rows_total, _LANE)

    # Tile rows directly (image boundaries are irrelevant for an elementwise
    # cast over a contiguous slab).  Block rows must be a multiple of 8
    # (sublane constraint); aim for >= 2 grid steps so v7x's two TensorCores
    # both get work, capped at _MAX_BLOCK_ROWS to amortize per-step overhead
    # while keeping the double-buffered footprint small.
    if rows_total <= 8:
        block_rows = rows_total                       # single tiny full block
    else:
        block_rows = min(_MAX_BLOCK_ROWS,
                         _round_up(pl.cdiv(rows_total, 2), 8))
    grid = (pl.cdiv(rows_total, block_rows),)

    in_bytes = total * x.dtype.itemsize
    out_bytes = total * 4

    out2d = pl.pallas_call(
        _cast_copy_kernel,
        out_shape=jax.ShapeDtypeStruct((rows_total, _LANE), jnp.float32),
        grid=grid,
        in_specs=[pl.BlockSpec((block_rows, _LANE), lambda i: (i, 0))],
        out_specs=pl.BlockSpec((block_rows, _LANE), lambda i: (i, 0)),
        compiler_params=pltpu.CompilerParams(
            dimension_semantics=("parallel",),
            vmem_limit_bytes=32 << 20),
        cost_estimate=pl.CostEstimate(flops=0, transcendentals=0,
                                      bytes_accessed=in_bytes + out_bytes),
    )(x2d)

    # Free metadata reshape back to the PyTorch view shape.
    return out2d.reshape(n, 3, 64, 64)


# ----------------------------- pure-JAX reference ----------------------------

def reference_forward(x):
    return x.reshape(-1, 3, 64, 64).astype(jnp.float32)


# ----------------------------------- main -------------------------------------

if __name__ == "__main__":
    key = jax.random.PRNGKey(0)
    # Batch of 2 images, 3x64x64, delivered in bfloat16 so the `.float()` cast
    # in the forward actually does device work (bf16 -> f32 is exact, so the
    # comparison against the reference is exact too).
    x = jax.random.normal(key, (2, 3, 64, 64), jnp.float32).astype(jnp.bfloat16)

    out = jax.block_until_ready(forward(x))
    assert out.shape == (2, 3, 64, 64)
    assert out.dtype == jnp.float32

    ref = reference_forward(x)
    np.testing.assert_allclose(np.asarray(out), np.asarray(ref), rtol=0, atol=0)

    # f32 fast path (metadata-only reshape, no kernel launch).
    x32 = jax.random.normal(key, (2 * 3 * 64 * 64,), jnp.float32)
    out32 = jax.block_until_ready(forward(x32))
    assert out32.shape == (2, 3, 64, 64) and out32.dtype == jnp.float32
    np.testing.assert_allclose(np.asarray(out32), np.asarray(reference_forward(x32)),
                               rtol=0, atol=0)

    print("KERNEL_OK")
</pallas_src>

<mosaic_0001>
module attributes {stable_mosaic.version = 11 : i64} {
  func.func @_cast_copy_kernel(%arg0: i32, %arg1: memref<16x1024xbf16, #tpu.memory_space<vmem>>, %arg2: memref<16x1024xf32, #tpu.memory_space<vmem>>) attributes {dimension_semantics = [#tpu.dimension_semantics<parallel>], iteration_bounds = array<i64: 2>, scalar_prefetch = 0 : i64, scratch_operands = 0 : i64, tpu.core_type = #tpu.core_type<tc>, window_params = [{transform_indices = @transform_0, window_bounds = array<i64: 16, 1024>}, {transform_indices = @transform_1, window_bounds = array<i64: 16, 1024>}]} {
    %c0 = arith.constant 0 : index
    %c0_0 = arith.constant 0 : index
    %0 = vector.load %arg1[%c0, %c0_0] : memref<16x1024xbf16, #tpu.memory_space<vmem>>, vector<16x1024xbf16>
    %1 = arith.extf %0 : vector<16x1024xbf16> to vector<16x1024xf32>
    %c0_1 = arith.constant 0 : index
    %c0_2 = arith.constant 0 : index
    %2 = vector.load %arg2[%c0_1, %c0_2] : memref<16x1024xf32, #tpu.memory_space<vmem>>, vector<16x1024xf32>
    tpu.vector_store %arg2[%c0_1, %c0_2], %1 {strides = array<i32>} : memref<16x1024xf32, #tpu.memory_space<vmem>>, vector<16x1024xf32>,
    return
  }
  func.func @transform_0(%arg0: i32) -> (i32, i32) {
    %c0_i32 = arith.constant 0 : i32
    %c0_i32_0 = arith.constant 0 : i32
    return %arg0, %c0_i32 : i32, i32
  }
  func.func @transform_1(%arg0: i32) -> (i32, i32) {
    %c0_i32 = arith.constant 0 : i32
    %c0_i32_0 = arith.constant 0 : i32
    return %arg0, %c0_i32 : i32, i32
  }
}

</mosaic_0001>

<llo_original>
// kernel: tpu_custom_call.1
$region0: #{tpu_custom_call.1}
  #allocation0 [shape = 'u32[]', space=smem, size = 0x4, offset = 0x4, fixed_abs, tag = 'smem constant byte address 0x4 - core index']
  #allocation1 [shape = 'u32[144,128]{1,0:T(1,128)}', space=vmem, size = 0x12000, scoped, tag = 'internal scratch']
  %s0 = inlined_call_operand.hbm [shape: bf16[24,1024], index: 0, kind: input, shape index: {}]
  %s1 = inlined_call_operand.hbm [shape: f32[24,1024], index: 1, kind: output, shape index: {}]
  %s2 = sld [smem:[#allocation0]]
  $region41: #{tpu_custom_call.1} parent=0
    _
  %s4 = ssub.s32 1, %s2
  %s5 = scalar_select 0, %s4, %s2
  $region1: #{tpu_custom_call.1} parent=0
    #allocation2 [shape = 'u8[65536]{0}', space=vmem, size = 0x10000, scoped, tag = 'input window, operand 0']
    #allocation3 [shape = 's32[2]{0}', space=sflag, size = 0x8, scoped, tag = 'scoped memory for tpu_custom_call.1']
    #allocation4 [shape = 's32[2]{0}', space=sflag, size = 0x8, scoped, tag = 'scoped memory for tpu_custom_call.1']
    #allocation5 [shape = 'u8[131072]{0}', space=vmem, size = 0x20000, scoped, tag = 'output window, operand 0']
    %6 = vsyncpa [#allocation3], 0
    %s7 = scalar_lea.sflag [#allocation3], 1
    %8 = vsyncpa %s7, 0
    %9 = vsyncpa [#allocation4], 0
    %s10 = scalar_lea.sflag [#allocation4], 1
    %11 = vsyncpa %s10, 0
    loop: start=0, step=1, limit=4
    $region2: #{tpu_custom_call.1} parent=1 // loop_pre_header
      _
    $region3: #{tpu_custom_call.1} parent=1 // loop_header
      %s13 = sphi 0, %s17
      %p14 = scmp.ge.s32.totalorder %s13, 4
      %s23 = sphi 0, %s25
      %s26 = sphi 0, %s23
      %s27 = sphi 0, %s26
      %s43 = sphi 0, %s27
      %s49 = sphi 0, %s51
      %s52 = sphi 0, %s49
      %s53 = sphi 0, %s52
      %s69 = sphi 0, %s53
    $region4: #{tpu_custom_call.1} parent=1 // loop_header_branch
      %16 = sbr.rel (%p14) target = $region8
    $region5: #{tpu_custom_call.1} parent=1 // loop_body
      %s18 = ssub.s32 %s13, 1
      %s19 = ssub.s32 %s13, 2
      %s20 = sadd.s32 %s13, 1
      %s21 = ssub.s32 %s13, %s20
      %p22 = scmp.eq.s32.totalorder %s21, 0
      %s24 = sadd.s32 %s23, 1
      %s25 = scalar_select %p22, %s23, %s24
      %p28 = pneg %p22
      %p29 = scmp.eq.s32.totalorder %s13, 1
      %p30 = por %p28, %p29
      %p31 = scmp.ne.s32.totalorder %s23, %s26
      %p32 = scmp.eq.s32.totalorder %s13, 0
      %p33 = por %p31, %p32
      %p34 = scmp.ne.s32.totalorder %s23, %s26
      %p35 = scmp.eq.s32.totalorder %s18, 1
      %p36 = por %p34, %p35
      %p37 = scmp.ne.s32.totalorder %s26, %s27
      %p38 = scmp.eq.s32.totalorder %s18, 0
      %p39 = por %p37, %p38
      %p40 = scmp.ne.s32.totalorder %s26, %s27
      %p41 = scmp.eq.s32.totalorder %s19, 1
      %p42 = por %p40, %p41
      %p44 = scmp.ne.s32.totalorder %s27, %s43
      %p45 = scmp.eq.s32.totalorder %s19, 0
      %p46 = por %p44, %p45
      %s47 = ssub.s32 %s13, %s20
      %p48 = scmp.eq.s32.totalorder %s47, 0
      %s50 = sadd.s32 %s49, 1
      %s51 = scalar_select %p48, %s49, %s50
      %p54 = pneg %p48
      %p55 = scmp.eq.s32.totalorder %s13, 1
      %p56 = por %p54, %p55
      %p57 = scmp.ne.s32.totalorder %s49, %s52
      %p58 = scmp.eq.s32.totalorder %s13, 0
      %p59 = por %p57, %p58
      %p60 = scmp.ne.s32.totalorder %s49, %s52
      %p61 = scmp.eq.s32.totalorder %s18, 1
      %p62 = por %p60, %p61
      %p63 = scmp.ne.s32.totalorder %s52, %s53
      %p64 = scmp.eq.s32.totalorder %s18, 0
      %p65 = por %p63, %p64
      %p66 = scmp.ne.s32.totalorder %s52, %s53
      %p67 = scmp.eq.s32.totalorder %s19, 1
      %p68 = por %p66, %p67
      %p70 = scmp.ne.s32.totalorder %s53, %s69
      %p71 = scmp.eq.s32.totalorder %s19, 0
      %p72 = por %p70, %p71
      %p73 = scmp.le.s32.totalorder 1, %s13
      %p74 = scmp.lt.s32.totalorder %s13, 3
      %p75 = pnand %p73, %p74
      %p76 = pneg %p75
      // Predicated region
      $region9: #{tpu_custom_call.1} parent=5 // pred_check
        _
      $region10: #{tpu_custom_call.1} parent=5 // pred_check_branch
        %78 = sbr.rel (%p75) target = $region12
      $region11: #{tpu_custom_call.1} parent=5 // pred_region
        %s79 = ssub.s32 %s13, 1
      $region12: #{tpu_custom_call.1} parent=5 // pred_fallthru
        _
      %p80 = scmp.lt.s32.totalorder %s13, 2
      // Predicated region
      $region13: #{tpu_custom_call.1} parent=5 // pred_check
        %p81 = pneg %p80
      $region14: #{tpu_custom_call.1} parent=5 // pred_check_branch
        %83 = sbr.rel (%p81) target = $region16
      $region15: #{tpu_custom_call.1} parent=5 // pred_region
        // Predicated region
        $region17: #{tpu_custom_call.1} parent=15 // pred_check
          %p84 = pneg %p33
        $region18: #{tpu_custom_call.1} parent=15 // pred_check_branch
          %86 = sbr.rel (%p84) target = $region20
        $region19: #{tpu_custom_call.1} parent=15 // pred_region
          %s87 = sand.u32 %s23, 1
          %s88 = scalar_lea.sflag [#allocation3], %s87
          %s89 = sand.u32 %s23, 1
          %s90 = smul.addr %s89, 64
          %s91 = scalar_lea.vmem [#allocation2], %s90
          %s92 = smul.u32 2, %s13
          %s93 = ssub.s32 3, %s92
          %p94 = scmp.lt.s32.totalorder %s93, 2
          %s95 = scalar_select %p94, %s93, 2
          %s96 = smul.u32 64, %s95
          %s97 = smul.u32 %s96, 8
          %s99 = ssub.s32 1024, %s97
          %100 = vsyncadd %s88, %s99
          %p101 = scmp.ne.s32.totalorder 0, %s97
          %s102 = smul.addr %s92, 8
          %s103 = smul.addr %s102, 64
          %s104 = scalar_lea.hbm %s0, %s103
          %s105 = smul.u32 32, %s95
          %s106 = sshll.u32 %s91, 4
          %s107 = int_to_ptr.vmem [resolvable:$true] %s106
          %s108 = sshll.u32 %s105, 4
          %112 = dma.hbm_to_vmem [thread:$0]  (%p101), %s104, %s108, %s107, %s88, 512, 512, 32
        $region20: #{tpu_custom_call.1} parent=15 // pred_fallthru
          _
      $region16: #{tpu_custom_call.1} parent=5 // pred_fallthru
        _
      %p113 = scmp.le.s32.totalorder 1, %s13
      %p114 = scmp.lt.s32.totalorder %s13, 3
      %p115 = pnand %p113, %p114
      %p116 = pneg %p115
      // Predicated region
      $region21: #{tpu_custom_call.1} parent=5 // pred_check
        _
      $region22: #{tpu_custom_call.1} parent=5 // pred_check_branch
        %118 = sbr.rel (%p115) target = $region24
      $region23: #{tpu_custom_call.1} parent=5 // pred_region
        %s119 = ssub.s32 %s13, 1
        %s120 = sand.u32 %s26, 1
        %s121 = scalar_lea.sflag [#allocation3], %s120
        %s122 = sand.u32 %s26, 1
        %s123 = smul.addr %s122, 64
        %s124 = scalar_lea.vmem [#allocation2], %s123
        // Predicated region
        $region25: #{tpu_custom_call.1} parent=23 // pred_check
          %p125 = pneg %p39
        $region26: #{tpu_custom_call.1} parent=23 // pred_check_branch
          %127 = sbr.rel (%p125) target = $region28
        $region27: #{tpu_custom_call.1} parent=23 // pred_region
          %128 = dma.done %s121, 1024
        $region28: #{tpu_custom_call.1} parent=23 // pred_fallthru
          _
        %s129 = sand.u32 %s26, 1
        %s130 = scalar_lea.sflag [#allocation3], %s129
        %s131 = sand.u32 %s26, 1
        %s132 = smul.addr %s131, 64
        %s133 = scalar_lea.vmem [#allocation2], %s132
        %p134 = pneg %p39
        %p135 = pneg %p36
        %p136 = pneg %p65
        %p137 = pneg %p62
        %s138 = sand.u32 %s52, 1
        %s139 = scalar_lea.sflag [#allocation4], %s138
        %s140 = sand.u32 %s52, 1
        %s141 = smul.addr %s140, 128
        %s142 = scalar_lea.vmem [#allocation5], %s141
        %s143 = smul.u32 2, %s18
        %s144 = ssub.s32 3, %s143
        %p145 = scmp.lt.s32.totalorder %s144, 2
        %s146 = scalar_select %p145, %s144, 2
        %s147 = smul.u32 64, %s146
        %s148 = smul.u32 %s147, 8
        %s149 = smul.u32 2, %s18
        %s150 = ssub.s32 3, %s149
        %p151 = scmp.lt.s32.totalorder %s150, 2
        %s152 = scalar_select %p151, %s150, 2
        %s153 = smul.u32 128, %s152
        %s154 = smul.u32 %s153, 8
        %v155 = vld [vmem:[%s124] sm:$0xff]
        %v156 = vld [vmem:[%s124 + $0x8] sm:$0xff]
        %v157 = vld [vmem:[%s124 + $0x10] sm:$0xff]
        %v158 = vld [vmem:[%s124 + $0x18] sm:$0xff]
        %v159 = vld [vmem:[%s124 + $0x20] sm:$0xff]
        %v160 = vld [vmem:[%s124 + $0x28] sm:$0xff]
        %v161 = vld [vmem:[%s124 + $0x30] sm:$0xff]
        %v162 = vld [vmem:[%s124 + $0x38] sm:$0xff]
        %v163 = vunpack.c.l.bf16 %v155
        %v164 = vunpack.c.h.bf16 %v155
        %v165 = vunpack.c.l.bf16 %v156
        %v166 = vunpack.c.h.bf16 %v156
        %v167 = vunpack.c.l.bf16 %v157
        %v168 = vunpack.c.h.bf16 %v157
        %v169 = vunpack.c.l.bf16 %v158
        %v170 = vunpack.c.h.bf16 %v158
        %v171 = vunpack.c.l.bf16 %v159
        %v172 = vunpack.c.h.bf16 %v159
        %v173 = vunpack.c.l.bf16 %v160
        %v174 = vunpack.c.h.bf16 %v160
        %v175 = vunpack.c.l.bf16 %v161
        %v176 = vunpack.c.h.bf16 %v161
        %v177 = vunpack.c.l.bf16 %v162
        %v178 = vunpack.c.h.bf16 %v162
        %179 = vst [vmem:[%s142] sm:$0xff] %v163
        %180 = vst [vmem:[%s142 + $0x8] sm:$0xff] %v164
        %181 = vst [vmem:[%s142 + $0x10] sm:$0xff] %v165
        %182 = vst [vmem:[%s142 + $0x18] sm:$0xff] %v166
        %183 = vst [vmem:[%s142 + $0x20] sm:$0xff] %v167
        %184 = vst [vmem:[%s142 + $0x28] sm:$0xff] %v168
        %185 = vst [vmem:[%s142 + $0x30] sm:$0xff] %v169
        %186 = vst [vmem:[%s142 + $0x38] sm:$0xff] %v170
        %187 = vst [vmem:[%s142 + $0x40] sm:$0xff] %v171
        %188 = vst [vmem:[%s142 + $0x48] sm:$0xff] %v172
        %189 = vst [vmem:[%s142 + $0x50] sm:$0xff] %v173
        %190 = vst [vmem:[%s142 + $0x58] sm:$0xff] %v174
        %191 = vst [vmem:[%s142 + $0x60] sm:$0xff] %v175
        %192 = vst [vmem:[%s142 + $0x68] sm:$0xff] %v176
        %193 = vst [vmem:[%s142 + $0x70] sm:$0xff] %v177
        %194 = vst [vmem:[%s142 + $0x78] sm:$0xff] %v178
        %s195 = sand.u32 %s52, 1
        %s196 = scalar_lea.sflag [#allocation4], %s195
        %s197 = sand.u32 %s52, 1
        %s198 = smul.addr %s197, 128
        %s199 = scalar_lea.vmem [#allocation5], %s198
        // Predicated region
        $region29: #{tpu_custom_call.1} parent=23 // pred_check
          %p200 = pneg %p62
        $region30: #{tpu_custom_call.1} parent=23 // pred_check_branch
          %202 = sbr.rel (%p200) target = $region32
        $region31: #{tpu_custom_call.1} parent=23 // pred_region
          %s203 = smul.u32 2, %s18
          %s204 = ssub.s32 3, %s203
          %p205 = scmp.lt.s32.totalorder %s204, 2
          %s206 = scalar_select %p205, %s204, 2
          %s207 = smul.u32 128, %s206
          %s208 = smul.u32 %s207, 8
          %s210 = ssub.s32 2048, %s208
          %211 = vsyncadd %s196, %s210
          %p212 = scmp.ne.s32.totalorder 0, %s208
          %s213 = smul.addr %s203, 8
          %s214 = smul.addr %s213, 128
          %s215 = scalar_lea.hbm %s1, %s214
          %s216 = smul.u32 64, %s206
          %s217 = sshll.u32 %s199, 4
          %s218 = int_to_ptr.vmem [resolvable:$true] %s217
          %s219 = sshll.u32 %s216, 4
          %223 = dma.vmem_to_hbm [thread:$0]  (%p212), %s218, %s219, %s215, %s196, 1024, 1024, 64
        $region32: #{tpu_custom_call.1} parent=23 // pred_fallthru
          _
      $region24: #{tpu_custom_call.1} parent=5 // pred_fallthru
        _
      %p224 = scmp.le.s32.totalorder 2, %s13
      // Predicated region
      $region33: #{tpu_custom_call.1} parent=5 // pred_check
        %p225 = pneg %p224
      $region34: #{tpu_custom_call.1} parent=5 // pred_check_branch
        %227 = sbr.rel (%p225) target = $region36
      $region35: #{tpu_custom_call.1} parent=5 // pred_region
        %s228 = ssub.s32 %s13, 2
        // Predicated region
        $region37: #{tpu_custom_call.1} parent=35 // pred_check
          %p229 = pneg %p68
        $region38: #{tpu_custom_call.1} parent=35 // pred_check_branch
          %231 = sbr.rel (%p229) target = $region40
        $region39: #{tpu_custom_call.1} parent=35 // pred_region
          %s232 = sand.u32 %s53, 1
          %s233 = scalar_lea.sflag [#allocation4], %s232
          %s234 = sand.u32 %s53, 1
          %s235 = smul.addr %s234, 128
          %s236 = scalar_lea.vmem [#allocation5], %s235
          %237 = dma.done %s233, 2048
        $region40: #{tpu_custom_call.1} parent=35 // pred_fallthru
          _
      $region36: #{tpu_custom_call.1} parent=5 // pred_fallthru
        _
    $region6: #{tpu_custom_call.1} parent=1 // loop_footer
      %s17 = sadd.s32 1, %s13
    $region7: #{tpu_custom_call.1} parent=1 // loop_footer_branch
      %12 = sbr.rel target = $region3
    $region8: #{tpu_custom_call.1} parent=1 // loop_exit
      _
    %238 = vsyncpa [#allocation3], 1
    %s239 = scalar_lea.sflag [#allocation3], 1
    %240 = vsyncpa %s239, 1
    %241 = vsyncpa [#allocation4], 1
    %s242 = scalar_lea.sflag [#allocation4], 1
    %243 = vsyncpa %s242, 1

</llo_original>
